<compile_context>
chip_gen: v7x
topology: tpu7x:2x2x1
jax: 0.10.0
libtpu: 0.0.40
codegen_flags: <defaults>
</compile_context>

<pallas_src>
import jax
import jax.numpy as jnp
from jax.experimental import pallas as pl
from jax.experimental.pallas import tpu as pltpu


def _identity_kernel(y_ref, o_ref):
    # Pure pass-through: the base context model defines no transformation.
    o_ref[...] = y_ref[...]


def _choose_block_rows(rows: int, max_block_rows: int = 1024) -> int:
    """Largest sublane-aligned row-block <= max_block_rows that evenly tiles `rows`."""
    if rows <= max_block_rows:
        return rows
    cand = (max_block_rows // 8) * 8
    while cand >= 8:
        if rows % cand == 0:
            return cand
        cand -= 8
    return rows  # fall back to a single full-array block (always legal)


def _lane_dense_view(shape):
    """Pick a (rows, cols) 2D view with cols a multiple of 128 when possible."""
    n, c, h, w = shape
    total = n * c * h * w
    if (h * w) % 128 == 0:
        return n * c, h * w
    if total % 128 == 0:
        return total // 128, 128
    # Last resort: full-array block still compiles (block dims == array dims).
    return n * c * h, w


@jax.jit
def base_context_model_forward(y_hat: jax.Array) -> jax.Array:
    """Pallas 'forward' for BaseContextModel: identity on y_hat (NCHW)."""
    n, c, h, w = y_hat.shape
    rows, cols = _lane_dense_view((n, c, h, w))
    y2d = y_hat.reshape(rows, cols)

    block_rows = _choose_block_rows(rows)
    grid = (rows // block_rows,)

    out2d = pl.pallas_call(
        _identity_kernel,
        out_shape=jax.ShapeDtypeStruct((rows, cols), y2d.dtype),
        grid=grid,
        in_specs=[pl.BlockSpec((block_rows, cols), lambda i: (i, 0))],
        out_specs=pl.BlockSpec((block_rows, cols), lambda i: (i, 0)),
        input_output_aliases={0: 0},  # output aliases input: no extra HBM buffer
        compiler_params=pltpu.CompilerParams(
            dimension_semantics=("parallel",),
        ),
    )(y2d)

    return out2d.reshape(n, c, h, w)


# forward_compress() in the reference is equally abstract; same pass-through.
base_context_model_forward_compress = base_context_model_forward


if __name__ == "__main__":
    key = jax.random.PRNGKey(0)
    # Small NCHW latent, consistent with a compression context model input.
    y_hat = jax.random.normal(key, (2, 4, 16, 16), dtype=jnp.float32)

    out = base_context_model_forward(y_hat)
    out = jax.block_until_ready(out)

    assert out.shape == y_hat.shape
    assert out.dtype == y_hat.dtype
    assert bool(jnp.allclose(out, y_hat))

    print("KERNEL_OK")
</pallas_src>

<mosaic_0001>
module attributes {stable_mosaic.version = 11 : i64} {
  func.func @_identity_kernel(%arg0: i32, %arg1: memref<8x256xf32, #tpu.memory_space<vmem>>, %arg2: memref<8x256xf32, #tpu.memory_space<vmem>>) attributes {dimension_semantics = [#tpu.dimension_semantics<parallel>], iteration_bounds = array<i64: 1>, scalar_prefetch = 0 : i64, scratch_operands = 0 : i64, tpu.core_type = #tpu.core_type<tc>, window_params = [{transform_indices = @transform_0, window_bounds = array<i64: 8, 256>}, {transform_indices = @transform_1, window_bounds = array<i64: 8, 256>}]} {
    %c0 = arith.constant 0 : index
    %c0_0 = arith.constant 0 : index
    %0 = vector.load %arg1[%c0, %c0_0] : memref<8x256xf32, #tpu.memory_space<vmem>>, vector<8x256xf32>
    %c0_1 = arith.constant 0 : index
    %c0_2 = arith.constant 0 : index
    %1 = vector.load %arg2[%c0_1, %c0_2] : memref<8x256xf32, #tpu.memory_space<vmem>>, vector<8x256xf32>
    tpu.vector_store %arg2[%c0_1, %c0_2], %0 {strides = array<i32>} : memref<8x256xf32, #tpu.memory_space<vmem>>, vector<8x256xf32>,
    return
  }
  func.func @transform_0(%arg0: i32) -> (i32, i32) {
    %c0_i32 = arith.constant 0 : i32
    %c0_i32_0 = arith.constant 0 : i32
    return %arg0, %c0_i32 : i32, i32
  }
  func.func @transform_1(%arg0: i32) -> (i32, i32) {
    %c0_i32 = arith.constant 0 : i32
    %c0_i32_0 = arith.constant 0 : i32
    return %arg0, %c0_i32 : i32, i32
  }
}

</mosaic_0001>

<llo_original>
// kernel: base_context_model_forward.1
$region0: #{base_context_model_forward.1}
  #allocation0 [shape = 'u32[]', space=smem, size = 0x4, offset = 0x4, fixed_abs, tag = 'smem constant byte address 0x4 - core index']
  #allocation1 [shape = 'u32[144,128]{1,0:T(1,128)}', space=vmem, size = 0x12000, scoped, tag = 'internal scratch']
  %s0 = inlined_call_operand.vmem [shape: f32[8,256], index: 0, kind: input, shape index: {}, may-alias: {0,1}]
  %s1 = inlined_call_operand.vmem [shape: f32[8,256], index: 1, kind: output, shape index: {}, may-alias: {0,1}]
  %s2 = sld [smem:[#allocation0]]
  $region14: #{base_context_model_forward.1} parent=0
    _
  %s4 = ssub.s32 1, %s2
  %s5 = scalar_select 0, %s4, %s2
  // Predicated region
  $region2: #{base_context_model_forward.1} parent=0 // pred_check
    _
  $region3: #{base_context_model_forward.1} parent=0 // pred_check_branch
    %7 = sbr.rel (0) target = $region5
  $region4: #{base_context_model_forward.1} parent=0 // pred_region
    _
  $region5: #{base_context_model_forward.1} parent=0 // pred_fallthru
    _
  %v8 = vld [vmem:[%s0] sm:$0xff]
  %v9 = vld [vmem:[%s0 + $0x8] sm:$0xff]
  %10 = vst [vmem:[%s1] sm:$0xff] %v8
  %11 = vst [vmem:[%s1 + $0x8] sm:$0xff] %v9
  // Predicated region
  $region6: #{base_context_model_forward.1} parent=0 // pred_check
    _
  $region7: #{base_context_model_forward.1} parent=0 // pred_check_branch
    %13 = sbr.rel (0) target = $region9
  $region8: #{base_context_model_forward.1} parent=0 // pred_region
    _
  $region9: #{base_context_model_forward.1} parent=0 // pred_fallthru
    _
  // Predicated region
  $region10: #{base_context_model_forward.1} parent=0 // pred_check
    _
  $region11: #{base_context_model_forward.1} parent=0 // pred_check_branch
    %15 = sbr.rel (0) target = $region13
  $region12: #{base_context_model_forward.1} parent=0 // pred_region
    _
  $region13: #{base_context_model_forward.1} parent=0 // pred_fallthru
    _

</llo_original>
